<compile_context>
chip_gen: v6e
topology: v6e:2x2x1
jax: 0.10.0
libtpu: 0.0.40
codegen_flags: <defaults>
</compile_context>

<pallas_src>
import functools

import jax
import jax.numpy as jnp
import numpy as np
from jax.experimental import pallas as pl
from jax.experimental.pallas import tpu as pltpu


def penalized_tanh_kernel(x_ref, o_ref, *, negative_slope):
    x = x_ref[...]
    a = jnp.tanh(x)                                       # EUP slot
    o_ref[...] = jnp.where(x > 0, a, negative_slope * a)  # VPU mul + select


def penalized_tanh(x, negative_slope=0.25, *, target_tile_bytes=2 * 1024 * 1024):
    """Elementwise penalized tanh over an arbitrarily-shaped array."""
    orig_shape = x.shape
    dtype = jnp.dtype(x.dtype)
    itemsize = dtype.itemsize
    n = int(np.prod(orig_shape)) if len(orig_shape) else 1
    if n == 0:
        return x

    # dtype-aware sublane packing: f32 -> 8, bf16 -> 16, int8/fp8 -> 32.
    sublane = max(8, 32 // itemsize)

    flat = x.reshape(-1)  # free (bitcast) for a contiguous row-major buffer

    # Widest lane-dense layout that needs no padding; otherwise pad once.
    lanes = None
    for cand in (512, 256, 128):
        if n % cand == 0:
            lanes = cand
            break
    if lanes is None:
        lanes = 128
        rows = pl.cdiv(n, lanes)
        flat = jnp.pad(flat, (0, rows * lanes - n))
        padded = True
    else:
        rows = n // lanes
        padded = False
    x2d = flat.reshape(rows, lanes)

    # Row tile: ~target_tile_bytes, rounded to the sublane multiple.
    max_block_rows = max(
        sublane, (target_tile_bytes // (lanes * itemsize)) // sublane * sublane
    )
    if rows > max_block_rows:
        block_rows = max_block_rows
    elif rows >= 2 * sublane:
        # Guarantee >=2 grid steps so v7x can shard across its 2 TensorCores.
        block_rows = pl.cdiv(pl.cdiv(rows, 2), sublane) * sublane
    else:
        block_rows = rows  # single block equal to the full dim
    grid = (pl.cdiv(rows, block_rows),)  # partial edge block handled by Pallas

    out2d = pl.pallas_call(
        functools.partial(penalized_tanh_kernel, negative_slope=negative_slope),
        out_shape=jax.ShapeDtypeStruct((rows, lanes), dtype),
        grid=grid,
        in_specs=[pl.BlockSpec((block_rows, lanes), lambda i: (i, 0))],
        out_specs=pl.BlockSpec((block_rows, lanes), lambda i: (i, 0)),
        compiler_params=pltpu.CompilerParams(
            dimension_semantics=("parallel",),  # shards steps across TCs on v7x
        ),
        cost_estimate=pl.CostEstimate(
            flops=n, transcendentals=n, bytes_accessed=2 * n * itemsize
        ),
    )(x2d)

    out = out2d.reshape(-1)
    if padded:
        out = out[:n]
    return out.reshape(orig_shape)


def _reference(x, negative_slope):
    a = jnp.tanh(x)
    return jnp.where(x > 0, a, negative_slope * a)


if __name__ == "__main__":
    negative_slope = 0.25
    key = jax.random.PRNGKey(0)

    # Primary shape from the module's usage (elementwise -> any shape works).
    shapes = [
        (2, 4, 16, 16),  # fast path, single block
        (16, 600),       # fast path (lanes=128), multi-block with partial edge
        (3, 7, 5),       # ragged path (padded once, sliced off)
    ]

    for i, shape in enumerate(shapes):
        key, sub = jax.random.split(key)
        x = jax.random.normal(sub, shape, dtype=jnp.float32) * 2.0
        out = jax.block_until_ready(penalized_tanh(x, negative_slope))
        ref = _reference(x, negative_slope)
        np.testing.assert_allclose(
            np.asarray(out), np.asarray(ref), rtol=1e-6, atol=1e-6
        )

    print("KERNEL_OK")
</pallas_src>

<mosaic_0001>
module attributes {stable_mosaic.version = 11 : i64} {
  func.func @penalized_tanh_kernel(%arg0: i32, %arg1: memref<4x512xf32, #tpu.memory_space<vmem>>, %arg2: memref<4x512xf32, #tpu.memory_space<vmem>>) attributes {dimension_semantics = [#tpu.dimension_semantics<parallel>], iteration_bounds = array<i64: 1>, scalar_prefetch = 0 : i64, scratch_operands = 0 : i64, tpu.core_type = #tpu.core_type<tc>, window_params = [{transform_indices = @transform_0, window_bounds = array<i64: 4, 512>}, {transform_indices = @transform_1, window_bounds = array<i64: 4, 512>}]} {
    %c0 = arith.constant 0 : index
    %c0_0 = arith.constant 0 : index
    %0 = vector.load %arg1[%c0, %c0_0] : memref<4x512xf32, #tpu.memory_space<vmem>>, vector<4x512xf32>
    %1 = math.tanh %0 : vector<4x512xf32>
    %cst = arith.constant 0.000000e+00 : f32
    %2 = vector.broadcast %cst : f32 to vector<4x512xf32>
    %3 = arith.cmpf ogt, %0, %2 : vector<4x512xf32>
    %cst_1 = arith.constant 2.500000e-01 : f32
    %4 = vector.broadcast %cst_1 : f32 to vector<4x512xf32>
    %5 = arith.mulf %4, %1 : vector<4x512xf32>
    %6 = arith.select %3, %1, %5 : vector<4x512xi1>, vector<4x512xf32>
    %c0_2 = arith.constant 0 : index
    %c0_3 = arith.constant 0 : index
    %7 = vector.load %arg2[%c0_2, %c0_3] : memref<4x512xf32, #tpu.memory_space<vmem>>, vector<4x512xf32>
    tpu.vector_store %arg2[%c0_2, %c0_3], %6 {strides = array<i32>} : memref<4x512xf32, #tpu.memory_space<vmem>>, vector<4x512xf32>,
    return
  }
  func.func @transform_0(%arg0: i32) -> (i32, i32) {
    %c0_i32 = arith.constant 0 : i32
    %c0_i32_0 = arith.constant 0 : i32
    return %arg0, %c0_i32 : i32, i32
  }
  func.func @transform_1(%arg0: i32) -> (i32, i32) {
    %c0_i32 = arith.constant 0 : i32
    %c0_i32_0 = arith.constant 0 : i32
    return %arg0, %c0_i32 : i32, i32
  }
}

</mosaic_0001>

<llo_original>
// kernel: tpu_custom_call.1
$region0: #{tpu_custom_call.1}
  #allocation0 [shape = 'u32[]', space=smem, size = 0x4, offset = 0x4, fixed_abs, tag = 'smem constant byte address 0x4 - core index']
  #allocation1 [shape = 'u32[144,128]{1,0:T(1,128)}', space=vmem, size = 0x12000, scoped, tag = 'internal scratch']
  %s0 = inlined_call_operand.hbm [shape: f32[4,512], index: 0, kind: input, shape index: {}]
  %s1 = inlined_call_operand.hbm [shape: f32[4,512], index: 1, kind: output, shape index: {}]
  %s2 = sld [smem:[#allocation0]]
  $region18: #{tpu_custom_call.1} parent=0
    _
  %s4 = ssub.s32 1, %s2
  %s5 = scalar_select 0, %s4, %s2
  $region1: #{tpu_custom_call.1} parent=0
    #allocation2 [shape = 'u8[8192]{0}', space=vmem, size = 0x2000, scoped, tag = 'input window, operand 0, single buffered']
    #allocation3 [shape = 's32[1]{0}', space=sflag, size = 0x4, scoped, tag = 'scoped memory for tpu_custom_call.1']
    #allocation4 [shape = 's32[1]{0}', space=sflag, size = 0x4, scoped, tag = 'scoped memory for tpu_custom_call.1']
    #allocation5 [shape = 'u8[8192]{0}', space=vmem, size = 0x2000, scoped, tag = 'output window, operand 0, single buffered']
    %6 = vsyncpa [#allocation3], 0
    %7 = vsyncpa [#allocation4], 0
    // Predicated region
    $region2: #{tpu_custom_call.1} parent=1 // pred_check
      _
    $region3: #{tpu_custom_call.1} parent=1 // pred_check_branch
      %9 = sbr.rel (0) target = $region5
    $region4: #{tpu_custom_call.1} parent=1 // pred_region
      %s11 = ssub.s32 256, 256
      %12 = vsyncadd [#allocation3], %s11
      %s14 = sshll.u32 [#allocation2], 4
      %s15 = int_to_ptr.vmem [resolvable:$true] %s14
      %17 = dma.hbm_to_vmem [thread:$0]  %s0, 256, %s15, [#allocation3]
    $region5: #{tpu_custom_call.1} parent=1 // pred_fallthru
      _
    // Predicated region
    $region6: #{tpu_custom_call.1} parent=1 // pred_check
      _
    $region7: #{tpu_custom_call.1} parent=1 // pred_check_branch
      %19 = sbr.rel (0) target = $region9
    $region8: #{tpu_custom_call.1} parent=1 // pred_region
      %20 = dma.done [#allocation3], 256
    $region9: #{tpu_custom_call.1} parent=1 // pred_fallthru
      _
    %v21 = vld [vmem:[#allocation2] sm:$0xff]
    %v22 = vld [vmem:[#allocation2 + $0x8] sm:$0xff]
    %v23 = vtanh.pop %v21
    %v24 = vtanh.pop %v22
    %vm25 = vcmp.gt.f32.partialorder %v21, 0.0
    %vm26 = vcmp.gt.f32.partialorder %v22, 0.0
    %v27 = vmul.f32 %v23, 0.25
    %v28 = vmul.f32 %v24, 0.25
    %v29 = vsel %vm25, %v23, %v27
    %v30 = vsel %vm26, %v24, %v28
    %31 = vst [vmem:[#allocation5] sm:$0xff] %v29
    %32 = vst [vmem:[#allocation5 + $0x8] sm:$0xff] %v30
    // Predicated region
    $region10: #{tpu_custom_call.1} parent=1 // pred_check
      _
    $region11: #{tpu_custom_call.1} parent=1 // pred_check_branch
      %34 = sbr.rel (0) target = $region13
    $region12: #{tpu_custom_call.1} parent=1 // pred_region
      %s36 = ssub.s32 256, 256
      %37 = vsyncadd [#allocation4], %s36
      %s39 = sshll.u32 [#allocation5], 4
      %s40 = int_to_ptr.vmem [resolvable:$true] %s39
      %42 = dma.vmem_to_hbm [thread:$0]  %s40, 256, %s1, [#allocation4]
    $region13: #{tpu_custom_call.1} parent=1 // pred_fallthru
      _
    // Predicated region
    $region14: #{tpu_custom_call.1} parent=1 // pred_check
      _
    $region15: #{tpu_custom_call.1} parent=1 // pred_check_branch
      %44 = sbr.rel (0) target = $region17
    $region16: #{tpu_custom_call.1} parent=1 // pred_region
      %45 = dma.done [#allocation4], 256
    $region17: #{tpu_custom_call.1} parent=1 // pred_fallthru
      _
    %46 = vsyncpa [#allocation3], 1
    %47 = vsyncpa [#allocation4], 1

</llo_original>
